<compile_context>
chip_gen: v7x
topology: tpu7x:2x2x1
jax: 0.10.0
libtpu: 0.0.40
codegen_flags: <defaults>
</compile_context>

<pallas_src>
import jax
import jax.numpy as jnp
from jax import lax
from jax.experimental import pallas as pl
from jax.experimental.pallas import tpu as pltpu

C_IN = 4
C_OUT = 11
KH = KW = 6
DILATION = 2

K_RAW = C_IN * KH * KW   # 144 — multiple of 8; no K pad needed (Mosaic masks ragged lane tile)
N_PAD = 128              # pad C_out 11 -> 128: lane-dense, unmasked output stores


def matmul_bias_tanh_kernel(p_ref, w_ref, b_ref, o_ref):
    # p_ref: (M, 144)    im2col patches
    # w_ref: (144, 128)  weight slab (zero-padded output channels)
    # b_ref: (1, 128)    bias row (zero-padded)
    # o_ref: (M, 128)
    acc = jnp.dot(p_ref[...], w_ref[...], preferred_element_type=jnp.float32)
    o_ref[...] = jnp.tanh(acc + b_ref[...]).astype(o_ref.dtype)


def prepare_conv_params(w_oihw, bias):
    """One-time parameter prep (hoisted out of the per-call jitted path).

    OIHW -> (K=144, 128) weight slab and (1, 128) bias row. The K ordering
    (c_in, kh, kw) matches conv_general_dilated_patches' output-channel order.
    """
    cout = w_oihw.shape[0]
    w_mat = jnp.transpose(w_oihw.reshape(cout, K_RAW), (1, 0))            # (144, 11)
    w_mat = jnp.pad(w_mat, ((0, 0), (0, N_PAD - cout)))                   # (144, 128)
    b_row = jnp.pad(bias.reshape(1, cout), ((0, 0), (0, N_PAD - cout)))   # (1, 128)
    return w_mat, b_row


def conv2d_tanh_pallas(x_nchw, w_mat, b_row):
    """x_nchw: (N, C_in, H, W) f32; w_mat: (144, 128); b_row: (1, 128).

    Returns (N, C_out, OH, OW) f32, matching torch's Conv2d(dilation=2) + tanh.
    """
    N, _, H, W = x_nchw.shape
    eff = (KH - 1) * DILATION + 1
    OH = H - eff + 1
    OW = W - eff + 1
    if OH <= 0 or OW <= 0:
        raise ValueError(f"input spatial size {H}x{W} too small for dilated {KH}x{KW} kernel")
    M = N * OH * OW

    # Single-HLO im2col: output channels ordered (c_in, kh, kw), NHWC layout so
    # the (M, K) patch matrix is a contiguous (free) reshape.
    pat = lax.conv_general_dilated_patches(
        x_nchw,
        filter_shape=(KH, KW),
        window_strides=(1, 1),
        padding="VALID",
        rhs_dilation=(DILATION, DILATION),
        dimension_numbers=("NCHW", "OIHW", "NHWC"),
    ).reshape(M, K_RAW)

    out_slab = pl.pallas_call(
        matmul_bias_tanh_kernel,
        out_shape=jax.ShapeDtypeStruct((M, N_PAD), jnp.float32),
        in_specs=[
            pl.BlockSpec(memory_space=pltpu.MemorySpace.VMEM),
            pl.BlockSpec(memory_space=pltpu.MemorySpace.VMEM),
            pl.BlockSpec(memory_space=pltpu.MemorySpace.VMEM),
        ],
        out_specs=pl.BlockSpec(memory_space=pltpu.MemorySpace.VMEM),
        cost_estimate=pl.CostEstimate(
            flops=2 * M * K_RAW * N_PAD,
            transcendentals=M * N_PAD,
            bytes_accessed=4 * (M * K_RAW + K_RAW * N_PAD + N_PAD + M * N_PAD),
        ),
    )(pat, w_mat, b_row)

    # Drop padding lanes and restore NCHW (tiny: 792 elements). If NHWC is
    # acceptable downstream, return the reshape below without the transpose.
    out = out_slab[:, :C_OUT].reshape(N, OH, OW, C_OUT)
    return jnp.transpose(out, (0, 3, 1, 2))


def reference(x_nchw, w_oihw, bias):
    y = lax.conv_general_dilated(
        x_nchw, w_oihw,
        window_strides=(1, 1),
        padding="VALID",
        rhs_dilation=(DILATION, DILATION),
        dimension_numbers=("NCHW", "OIHW", "NCHW"),
    )
    return jnp.tanh(y + bias.reshape(1, -1, 1, 1))


if __name__ == "__main__":
    key = jax.random.PRNGKey(0)
    kx, kw_, kb = jax.random.split(key, 3)

    # Deterministic parameter init (uniform, PyTorch-style bound 1/sqrt(fan_in)).
    fan_in = C_IN * KH * KW
    bound = 1.0 / (fan_in ** 0.5)
    weight = jax.random.uniform(kw_, (C_OUT, C_IN, KH, KW), jnp.float32, -bound, bound)
    bias = jax.random.uniform(kb, (C_OUT,), jnp.float32, -bound, bound)

    # One-time weight/bias prep (outside the per-call jitted path).
    w_mat, b_row = prepare_conv_params(weight, bias)
    w_mat, b_row = jax.block_until_ready((w_mat, b_row))

    # Small valid input: batch=2, channels=4, spatial=16 -> output (2, 11, 6, 6).
    x = jax.random.normal(kx, (2, C_IN, 16, 16), jnp.float32)

    fwd = jax.jit(conv2d_tanh_pallas)
    out = jax.block_until_ready(fwd(x, w_mat, b_row))

    ref = jax.block_until_ready(reference(x, weight, bias))
    assert out.shape == (2, C_OUT, 6, 6), out.shape
    assert jnp.allclose(out, ref, atol=1e-5, rtol=1e-5), "mismatch vs reference conv"

    print("KERNEL_OK")
</pallas_src>

<mosaic_0001>
module attributes {stable_mosaic.version = 11 : i64} {
  func.func @matmul_bias_tanh_kernel(%arg0: memref<72x144xf32, #tpu.memory_space<vmem>>, %arg1: memref<144x128xf32, #tpu.memory_space<vmem>>, %arg2: memref<1x128xf32, #tpu.memory_space<vmem>>, %arg3: memref<72x128xf32, #tpu.memory_space<vmem>>) attributes {dimension_semantics = [], scalar_prefetch = 0 : i64, scratch_operands = 0 : i64, tpu.core_type = #tpu.core_type<tc>} {
    %c0 = arith.constant 0 : index
    %c0_0 = arith.constant 0 : index
    %0 = vector.load %arg0[%c0, %c0_0] : memref<72x144xf32, #tpu.memory_space<vmem>>, vector<72x144xf32>
    %c0_1 = arith.constant 0 : index
    %c0_2 = arith.constant 0 : index
    %1 = vector.load %arg1[%c0_1, %c0_2] : memref<144x128xf32, #tpu.memory_space<vmem>>, vector<144x128xf32>
    %cst = arith.constant dense<0.000000e+00> : vector<72x128xf32>
    %2 = tpu.matmul %0, %1, %cst {dimension_numbers = #tpu.dot_dimension_numbers<[1], [0], [0], [1], [0, 0, 1, 1], [], []>} : vector<72x144xf32>, vector<144x128xf32>, vector<72x128xf32> -> vector<72x128xf32>
    %c0_3 = arith.constant 0 : index
    %c0_4 = arith.constant 0 : index
    %3 = vector.load %arg2[%c0_3, %c0_4] : memref<1x128xf32, #tpu.memory_space<vmem>>, vector<1x128xf32>
    %4 = vector.broadcast %3 : vector<1x128xf32> to vector<72x128xf32>
    %5 = arith.addf %2, %4 : vector<72x128xf32>
    %6 = math.tanh %5 : vector<72x128xf32>
    %c0_5 = arith.constant 0 : index
    %c0_6 = arith.constant 0 : index
    %7 = vector.load %arg3[%c0_5, %c0_6] : memref<72x128xf32, #tpu.memory_space<vmem>>, vector<72x128xf32>
    tpu.vector_store %arg3[%c0_5, %c0_6], %6 {strides = array<i32>} : memref<72x128xf32, #tpu.memory_space<vmem>>, vector<72x128xf32>,
    return
  }
}

</mosaic_0001>

<llo_original>
// kernel: conv2d_tanh_pallas.1
$region0: #{conv2d_tanh_pallas.1}
  #allocation0 [shape = 'u32[]', space=smem, size = 0x4, offset = 0x4, fixed_abs, tag = 'smem constant byte address 0x4 - core index']
  #allocation1 [shape = 'u32[144,128]{1,0:T(1,128)}', space=vmem, size = 0x12000, scoped, tag = 'internal scratch']
  %s0 = inlined_call_operand.vmem [shape: f32[72,144], index: 0, kind: input, shape index: {}]
  %s1 = inlined_call_operand.vmem [shape: f32[144,128], index: 1, kind: input, shape index: {}]
  %s2 = inlined_call_operand.vmem [shape: f32[1,128], index: 2, kind: input, shape index: {}]
  %s3 = inlined_call_operand.vmem [shape: f32[72,128], index: 3, kind: output, shape index: {}]
  %s4 = sld [smem:[#allocation0]]
  $region22: #{conv2d_tanh_pallas.1} parent=0
    _
  %s6 = ssub.s32 1, %s4
  %s7 = scalar_select 0, %s6, %s4
  // Predicated region
  $region2: #{conv2d_tanh_pallas.1} parent=0 // pred_check
    _
  $region3: #{conv2d_tanh_pallas.1} parent=0 // pred_check_branch
    %9 = sbr.rel (0) target = $region5
  $region4: #{conv2d_tanh_pallas.1} parent=0 // pred_region
    _
  $region5: #{conv2d_tanh_pallas.1} parent=0 // pred_fallthru
    _
  // Predicated region
  $region6: #{conv2d_tanh_pallas.1} parent=0 // pred_check
    _
  $region7: #{conv2d_tanh_pallas.1} parent=0 // pred_check_branch
    %11 = sbr.rel (0) target = $region9
  $region8: #{conv2d_tanh_pallas.1} parent=0 // pred_region
    _
  $region9: #{conv2d_tanh_pallas.1} parent=0 // pred_fallthru
    _
  // Predicated region
  $region10: #{conv2d_tanh_pallas.1} parent=0 // pred_check
    _
  $region11: #{conv2d_tanh_pallas.1} parent=0 // pred_check_branch
    %13 = sbr.rel (0) target = $region13
  $region12: #{conv2d_tanh_pallas.1} parent=0 // pred_region
    _
  $region13: #{conv2d_tanh_pallas.1} parent=0 // pred_fallthru
    _
  %v14 = vld [vmem:[%s0] sm:$0xff]
  %v15 = vld [vmem:[%s0 + $0x8] sm:$0xff]
  %v16 = vld [vmem:[%s0 + $0x10] sm:$0xff]
  %v17 = vld [vmem:[%s0 + $0x18] sm:$0xff]
  %v18 = vld [vmem:[%s0 + $0x20] sm:$0xff]
  %v19 = vld [vmem:[%s0 + $0x28] sm:$0xff]
  %v20 = vld [vmem:[%s0 + $0x30] sm:$0xff]
  %v21 = vld [vmem:[%s0 + $0x38] sm:$0xff]
  %v22 = vld [vmem:[%s0 + $0x40] sm:$0xff]
  %v23 = vld [vmem:[%s0 + $0x48] sm:$0xff]
  %v24 = vld [vmem:[%s0 + $0x50] sm:$0xff]
  %v25 = vld [vmem:[%s0 + $0x58] sm:$0xff]
  %v26 = vld [vmem:[%s0 + $0x60] sm:$0xff]
  %v27 = vld [vmem:[%s0 + $0x68] sm:$0xff]
  %v28 = vld [vmem:[%s0 + $0x70] sm:$0xff]
  %v29 = vld [vmem:[%s0 + $0x78] sm:$0xff]
  %v30 = vld [vmem:[%s0 + $0x80] sm:$0xff]
  %v31 = vld [vmem:[%s0 + $0x88] sm:$0xff]
  %v32 = vld [vmem:[%s1] sm:$0xff]
  %v33 = vld [vmem:[%s1 + $0x8] sm:$0xff]
  %v34 = vld [vmem:[%s1 + $0x10] sm:$0xff]
  %v35 = vld [vmem:[%s1 + $0x18] sm:$0xff]
  %v36 = vld [vmem:[%s1 + $0x20] sm:$0xff]
  %v37 = vld [vmem:[%s1 + $0x28] sm:$0xff]
  %v38 = vld [vmem:[%s1 + $0x30] sm:$0xff]
  %v39 = vld [vmem:[%s1 + $0x38] sm:$0xff]
  %v40 = vld [vmem:[%s1 + $0x40] sm:$0xff]
  %v41 = vld [vmem:[%s1 + $0x48] sm:$0xff]
  %v42 = vld [vmem:[%s1 + $0x50] sm:$0xff]
  %v43 = vld [vmem:[%s1 + $0x58] sm:$0xff]
  %v44 = vld [vmem:[%s1 + $0x60] sm:$0xff]
  %v45 = vld [vmem:[%s1 + $0x68] sm:$0xff]
  %v46 = vld [vmem:[%s1 + $0x70] sm:$0xff]
  %v47 = vld [vmem:[%s1 + $0x78] sm:$0xff]
  %v48 = vld [vmem:[%s1 + $0x80] sm:$0xff]
  %v49 = vld [vmem:[%s1 + $0x88] sm:$0xff]
  %v50 = vld [vmem:[%s2] sm:$0x1]
  %v52 = vlaneseq
  %v53 = vshrl.u32 %v52, 7
  %v54 = vsub.s32 0, %v53
  %v55 = vrot.slane %v50, %v54
  %vm57 = vcmask 130048
  %v59 = vsel %vm57, %v15, 0
  %v62 = vsel %vm57, %v17, 0
  %v65 = vsel %vm57, %v19, 0
  %v68 = vsel %vm57, %v21, 0
  %v71 = vsel %vm57, %v23, 0
  %v74 = vsel %vm57, %v25, 0
  %v77 = vsel %vm57, %v27, 0
  %v80 = vsel %vm57, %v29, 0
  %v83 = vsel %vm57, %v31, 0
  %85 = vmatprep.subr.mxu0 0.0
  %86 = vmatpush1.msra.mxu0 %v32
  %87 = vmatprep.subr.mxu0 0.0
  %88 = vmatpush1.msra.mxu0 %v33
  %89 = vmatprep.subr.mxu0 0.0
  %90 = vmatpush1.msra.mxu0 %v34
  %91 = vmatprep.subr.mxu0 0.0
  %92 = vmatpush1.msra.mxu0 %v35
  %93 = vmatprep.subr.mxu0 0.0
  %94 = vmatpush1.msra.mxu0 %v36
  %95 = vmatprep.subr.mxu0 0.0
  %96 = vmatpush1.msra.mxu0 %v37
  %97 = vmatprep.subr.mxu0 0.0
  %98 = vmatpush1.msra.mxu0 %v38
  %99 = vmatprep.subr.mxu0 0.0
  %100 = vmatpush1.msra.mxu0 %v39
  %101 = vmatprep.subr.mxu0 0.0
  %102 = vmatpush1.msra.mxu0 %v40
  %103 = vmatprep.subr.mxu0 0.0
  %104 = vmatpush1.msra.mxu0 %v41
  %105 = vmatprep.subr.mxu0 0.0
  %106 = vmatpush1.msra.mxu0 %v42
  %107 = vmatprep.subr.mxu0 0.0
  %108 = vmatpush1.msra.mxu0 %v43
  %109 = vmatprep.subr.mxu0 0.0
  %110 = vmatpush1.msra.mxu0 %v44
  %111 = vmatprep.subr.mxu0 0.0
  %112 = vmatpush1.msra.mxu0 %v45
  %113 = vmatprep.subr.mxu0 0.0
  %114 = vmatpush1.msra.mxu0 %v46
  %115 = vmatprep.subr.mxu0 0.0
  %116 = vmatpush1.msra.mxu0 %v47
  %117 = vmatprep.subr.mxu0 0.0
  %118 = vmatpush1.msra.mxu0 %v48
  %119 = vmatprep.subr.mxu0 0.0
  %120 = vmatpush1.msra.mxu0 %v49
  %121 = vmatprep.subr.mxu0 0.0
  %122 = vmatpush1.msra.mxu0 0.0
  %123 = vmatprep.subr.mxu0 0.0
  %124 = vmatpush1.msra.mxu0 0.0
  %125 = vmatprep.subr.mxu0 0.0
  %126 = vmatpush1.msra.mxu0 0.0
  %127 = vmatprep.subr.mxu0 0.0
  %128 = vmatpush1.msra.mxu0 0.0
  %129 = vmatprep.subr.mxu0 0.0
  %130 = vmatpush1.msra.mxu0 0.0
  %131 = vmatprep.subr.mxu0 0.0
  %132 = vmatpush1.msra.mxu0 0.0
  %133 = vmatprep.subr.mxu0 0.0
  %134 = vmatpush1.msra.mxu0 0.0
  %135 = vmatprep.subr.mxu0 0.0
  %136 = vmatpush1.msra.mxu0 0.0
  %137 = vmatprep.subr.mxu0 0.0
  %138 = vmatpush1.msra.mxu0 0.0
  %139 = vmatprep.subr.mxu0 0.0
  %140 = vmatpush1.msra.mxu0 0.0
  %141 = vmatprep.subr.mxu0 0.0
  %142 = vmatpush1.msra.mxu0 0.0
  %143 = vmatprep.subr.mxu0 0.0
  %144 = vmatpush1.msra.mxu0 0.0
  %145 = vmatprep.subr.mxu0 0.0
  %146 = vmatpush1.msra.mxu0 0.0
  %147 = vmatprep.subr.mxu0 0.0
  %148 = vmatpush1.msra.mxu0 0.0
  %149 = vmatprep.mubr.f32.mxu0 %v59
  %150 = vmatmul.mubr.f32.gmra.mrb[0].mxu0 %v14
  %v151 = vpop.f32.mrb[0].mxu0
  %v152 = vadd.f32 %v55, %v151
  %v153 = vpop.f32.mrb[0].mxu0
  %154 = vmatprep.mubr.f32.mxu0 %v62
  %155 = vmatmul.mubr.f32.gmra.mrb[0].mxu0 %v16
  %v156 = vpop.f32.mrb[0].mxu0
  %v157 = vadd.f32 %v55, %v156
  %v158 = vpop.f32.mrb[0].mxu0
  %159 = vmatprep.mubr.f32.mxu0 %v65
  %160 = vmatmul.mubr.f32.gmra.mrb[0].mxu0 %v18
  %v161 = vpop.f32.mrb[0].mxu0
  %v162 = vadd.f32 %v55, %v161
  %v163 = vpop.f32.mrb[0].mxu0
  %164 = vmatprep.mubr.f32.mxu0 %v68
  %165 = vmatmul.mubr.f32.gmra.mrb[0].mxu0 %v20
  %v166 = vpop.f32.mrb[0].mxu0
  %v167 = vadd.f32 %v55, %v166
  %v168 = vpop.f32.mrb[0].mxu0
  %169 = vmatprep.mubr.f32.mxu0 %v71
  %170 = vmatmul.mubr.f32.gmra.mrb[0].mxu0 %v22
  %v171 = vpop.f32.mrb[0].mxu0
  %v172 = vadd.f32 %v55, %v171
  %v173 = vpop.f32.mrb[0].mxu0
  %174 = vmatprep.mubr.f32.mxu0 %v74
  %175 = vmatmul.mubr.f32.gmra.mrb[0].mxu0 %v24
  %v176 = vpop.f32.mrb[0].mxu0
  %v177 = vadd.f32 %v55, %v176
  %v178 = vpop.f32.mrb[0].mxu0
  %179 = vmatprep.mubr.f32.mxu0 %v77
  %180 = vmatmul.mubr.f32.gmra.mrb[0].mxu0 %v26
  %v181 = vpop.f32.mrb[0].mxu0
  %v182 = vadd.f32 %v55, %v181
  %v183 = vpop.f32.mrb[0].mxu0
  %184 = vmatprep.mubr.f32.mxu0 %v80
  %185 = vmatmul.mubr.f32.gmra.mrb[0].mxu0 %v28
  %v186 = vpop.f32.mrb[0].mxu0
  %v187 = vadd.f32 %v55, %v186
  %v188 = vpop.f32.mrb[0].mxu0
  %189 = vmatprep.mubr.f32.mxu0 %v83
  %190 = vmatmul.mubr.f32.gmra.mrb[0].mxu0 %v30
  %v191 = vpop.f32.mrb[0].mxu0
  %v192 = vadd.f32 %v55, %v191
  %v193 = vpop.f32.mrb[0].mxu0
  %194 = vdwg.mxu0
  %v195 = vtanh.pop %v152
  %v196 = vtanh.pop %v157
  %v197 = vtanh.pop %v162
  %v198 = vtanh.pop %v167
  %v199 = vtanh.pop %v172
  %v200 = vtanh.pop %v177
  %v201 = vtanh.pop %v182
  %v202 = vtanh.pop %v187
  %v203 = vtanh.pop %v192
  %204 = vst [vmem:[%s3] sm:$0xff] %v195
  %205 = vst [vmem:[%s3 + $0x8] sm:$0xff] %v196
  %206 = vst [vmem:[%s3 + $0x10] sm:$0xff] %v197
  %207 = vst [vmem:[%s3 + $0x18] sm:$0xff] %v198
  %208 = vst [vmem:[%s3 + $0x20] sm:$0xff] %v199
  %209 = vst [vmem:[%s3 + $0x28] sm:$0xff] %v200
  %210 = vst [vmem:[%s3 + $0x30] sm:$0xff] %v201
  %211 = vst [vmem:[%s3 + $0x38] sm:$0xff] %v202
  %212 = vst [vmem:[%s3 + $0x40] sm:$0xff] %v203
  // Predicated region
  $region14: #{conv2d_tanh_pallas.1} parent=0 // pred_check
    _
  $region15: #{conv2d_tanh_pallas.1} parent=0 // pred_check_branch
    %214 = sbr.rel (0) target = $region17
  $region16: #{conv2d_tanh_pallas.1} parent=0 // pred_region
    _
  $region17: #{conv2d_tanh_pallas.1} parent=0 // pred_fallthru
    _
  // Predicated region
  $region18: #{conv2d_tanh_pallas.1} parent=0 // pred_check
    _
  $region19: #{conv2d_tanh_pallas.1} parent=0 // pred_check_branch
    %216 = sbr.rel (0) target = $region21
  $region20: #{conv2d_tanh_pallas.1} parent=0 // pred_region
    _
  $region21: #{conv2d_tanh_pallas.1} parent=0 // pred_fallthru
    _

</llo_original>
